<compile_context>
chip_gen: v5e
topology: v5e:2x2
jax: 0.10.0
libtpu: 0.0.40
codegen_flags: <defaults>
</compile_context>

<pallas_src>
import functools

import jax
import jax.numpy as jnp
from jax.experimental import pallas as pl
from jax.experimental.pallas import tpu as pltpu


def _round_up(n, m):
    return ((n + m - 1) // m) * m


def _pick_tile(n, preferred):
    """Largest 128-multiple <= preferred, or the (128-padded) full extent if smaller."""
    return min(preferred, _round_up(n, 128))


def _pad2d(x, rows, cols):
    r, c = x.shape
    if r == rows and c == cols:
        return x
    return jnp.pad(x, ((0, rows - r), (0, cols - c)))


def _sage_layer_kernel(adj_ref, x_ref, w_ref, b_ref, dinv_ref, o_ref, acc_ref,
                       *, apply_relu):
    """One (dst-tile, src-tile) grid step of a fused SAGEConv layer.

    acc += A_tile @ X_tile (bf16 MXU, f32 acc); at the last K tile:
      h = (acc * deg_inv) @ W  (+ bias+0.01)  (+ relu)
    """
    k = pl.program_id(1)

    @pl.when(k == 0)
    def _():
        acc_ref[...] = jnp.zeros_like(acc_ref)

    # copy_u + sum aggregation as a bf16 matmul with f32 accumulation.
    acc_ref[...] += jnp.dot(adj_ref[...], x_ref[...],
                            preferred_element_type=jnp.float32)

    @pl.when(k == pl.num_programs(1) - 1)
    def _():
        # mean = sum * (1/deg); deg_inv precomputed on host in f32.
        h_neigh = acc_ref[...] * dinv_ref[...]
        # fc_neigh in bf16 (matches the autocast(bf16) reference path), f32 acc.
        h = jnp.dot(h_neigh.astype(jnp.bfloat16), w_ref[...],
                    preferred_element_type=jnp.float32)
        h = h + b_ref[...]                      # bias already contains the +0.01
        if apply_relu:
            h = jnp.maximum(h, 0.0)             # F.relu between layers
        o_ref[...] = h.astype(o_ref.dtype)


def sage_layer(adj_bf16, x_bf16, w_bf16, b_f32, deg_inv_f32, *,
               apply_relu, out_dtype, tm, tk):
    """All inputs already padded: adj (Ndst_p, Nsrc_p) bf16, x (Nsrc_p, Fin_p) bf16,
    w (Fin_p, Fout_p) bf16, b (1, Fout_p) f32 (includes +0.01), deg_inv (Ndst_p, 1) f32."""
    n_dst_p, n_src_p = adj_bf16.shape
    f_in_p = x_bf16.shape[1]
    f_out_p = w_bf16.shape[1]
    grid = (n_dst_p // tm, n_src_p // tk)

    kernel = functools.partial(_sage_layer_kernel, apply_relu=apply_relu)
    return pl.pallas_call(
        kernel,
        out_shape=jax.ShapeDtypeStruct((n_dst_p, f_out_p), out_dtype),
        grid_spec=pltpu.PrefetchScalarGridSpec(
            num_scalar_prefetch=0,
            grid=grid,
            in_specs=[
                pl.BlockSpec((tm, tk), lambda i, k: (i, k)),           # A tile
                pl.BlockSpec((tk, f_in_p), lambda i, k: (k, 0)),       # X tile
                pl.BlockSpec((f_in_p, f_out_p), lambda i, k: (0, 0)),  # W (resident)
                pl.BlockSpec((1, f_out_p), lambda i, k: (0, 0)),       # b + 0.01
                pl.BlockSpec((tm, 1), lambda i, k: (i, 0)),            # 1/deg
            ],
            out_specs=pl.BlockSpec((tm, f_out_p), lambda i, k: (i, 0)),
            scratch_shapes=[pltpu.VMEM((tm, f_in_p), jnp.float32)],
        ),
        compiler_params=pltpu.CompilerParams(
            dimension_semantics=("parallel", "arbitrary")),
    )(adj_bf16, x_bf16, w_bf16, b_f32, deg_inv_f32)


def graphsage_forward(blocks, x, params, *, tm_pref=256, tk_pref=1024):
    """blocks: list of dense f32 adjacency (n_dst, n_src); params: list of (W, b)
    with W shaped (f_in, f_out) (torch weight transposed) and b shaped (1, f_out)."""
    h = x
    n_layers = len(params)
    for l, (adj, (w, b)) in enumerate(zip(blocks, params)):
        n_dst, n_src = adj.shape
        f_in, f_out = w.shape
        apply_relu = l != n_layers - 1
        out_dtype = jnp.float32 if l == n_layers - 1 else jnp.bfloat16

        tm = _pick_tile(n_dst, tm_pref)
        tk = _pick_tile(n_src, tk_pref)
        n_dst_p = _round_up(n_dst, tm)
        n_src_p = _round_up(n_src, tk)
        f_in_p = _round_up(f_in, 128)
        f_out_p = _round_up(f_out, 128)

        # Host-side precompute (graph blocks are static): degree in f32, adj in bf16.
        deg = jnp.maximum(jnp.sum(adj, axis=1, keepdims=True), 1.0)
        deg_inv = _pad2d(1.0 / deg, n_dst_p, 1)
        adj_p = _pad2d(adj, n_dst_p, n_src_p).astype(jnp.bfloat16)

        x_p = _pad2d(h[:n_src].astype(jnp.bfloat16), n_src_p, f_in_p)
        w_p = _pad2d(w, f_in_p, f_out_p).astype(jnp.bfloat16)
        b_p = _pad2d(b + 0.01, 1, f_out_p)          # fold the +0.01 into the bias

        h = sage_layer(adj_p, x_p, w_p, b_p, deg_inv,
                       apply_relu=apply_relu, out_dtype=out_dtype, tm=tm, tk=tk)
        h = h[:n_dst, :f_out]
        # TODO(synk): dropout between layers is identity here (eval mode / p=0).
    return h.astype(jnp.float32)


def _xavier_uniform(key, fan_in, fan_out, gain):
    bound = gain * jnp.sqrt(6.0 / (fan_in + fan_out))
    # stored as (fan_in, fan_out), i.e. torch weight (out, in) transposed
    return jax.random.uniform(key, (fan_in, fan_out), jnp.float32, -bound, bound)


def _linear_bias(key, fan_in, fan_out):
    bound = 1.0 / jnp.sqrt(fan_in)
    return jax.random.uniform(key, (1, fan_out), jnp.float32, -bound, bound)


def _ref_forward(blocks, x, params):
    """Pure-JAX reference mirroring the kernel arithmetic (bf16 matmuls, f32 acc)."""
    h = x
    n = len(params)
    for l, (adj, (w, b)) in enumerate(zip(blocks, params)):
        deg_inv = 1.0 / jnp.maximum(jnp.sum(adj, axis=1, keepdims=True), 1.0)
        agg = jnp.dot(adj.astype(jnp.bfloat16), h.astype(jnp.bfloat16),
                      preferred_element_type=jnp.float32)
        h_neigh = agg * deg_inv
        out = jnp.dot(h_neigh.astype(jnp.bfloat16), w.astype(jnp.bfloat16),
                      preferred_element_type=jnp.float32) + (b + 0.01)
        if l != n - 1:
            out = jnp.maximum(out, 0.0).astype(jnp.bfloat16)
        h = out
    return h.astype(jnp.float32)


if __name__ == "__main__":
    key = jax.random.PRNGKey(0)

    # small, consistent shapes
    N = 128            # nodes per block (src == dst for simplicity)
    in_feats = 32
    n_hidden = 64
    n_classes = 16
    n_layers = 2       # GraphSAGE builds n_layers + 1 SAGEConv layers

    feat_dims = [in_feats] + [n_hidden] * n_layers + [n_classes]
    num_conv = len(feat_dims) - 1  # = 3

    keys = jax.random.split(key, 2 + 3 * num_conv)
    x = jax.random.normal(keys[0], (N, in_feats), jnp.float32)

    gain = jnp.sqrt(2.0)  # nn.init.calculate_gain('relu')
    blocks, params = [], []
    for l in range(num_conv):
        k_adj, k_w, k_b = keys[1 + 3 * l], keys[2 + 3 * l], keys[3 + 3 * l]
        # random sparse-ish graph block + self-loops so every dst has degree >= 1
        adj = (jax.random.uniform(k_adj, (N, N)) < 0.25).astype(jnp.float32)
        adj = jnp.maximum(adj, jnp.eye(N, dtype=jnp.float32))
        blocks.append(adj)
        w = _xavier_uniform(k_w, feat_dims[l], feat_dims[l + 1], gain)
        b = _linear_bias(k_b, feat_dims[l], feat_dims[l + 1])
        params.append((w, b))

    out = graphsage_forward(blocks, x, params)
    jax.block_until_ready(out)
    assert out.shape == (N, n_classes) and out.dtype == jnp.float32

    ref = _ref_forward(blocks, x, params)
    jax.block_until_ready(ref)
    assert bool(jnp.allclose(out, ref, rtol=1e-2, atol=1e-2)), "mismatch vs reference"

    print("KERNEL_OK")
</pallas_src>

<mosaic_0001>
module attributes {stable_mosaic.version = 11 : i64} {
  func.func @_sage_layer_kernel(%arg0: i32, %arg1: i32, %arg2: memref<128x128xbf16, #tpu.memory_space<vmem>>, %arg3: memref<128x128xbf16, #tpu.memory_space<vmem>>, %arg4: memref<128x128xbf16, #tpu.memory_space<vmem>>, %arg5: memref<1x128xf32, #tpu.memory_space<vmem>>, %arg6: memref<128x1xf32, #tpu.memory_space<vmem>>, %arg7: memref<128x128xbf16, #tpu.memory_space<vmem>>, %arg8: memref<128x128xf32, #tpu.memory_space<vmem>>) attributes {dimension_semantics = [#tpu.dimension_semantics<parallel>, #tpu.dimension_semantics<arbitrary>], iteration_bounds = array<i64: 1, 1>, scalar_prefetch = 0 : i64, scratch_operands = 1 : i64, tpu.core_type = #tpu.core_type<tc>, window_params = [{transform_indices = @transform_0, window_bounds = array<i64: 128, 128>}, {transform_indices = @transform_1, window_bounds = array<i64: 128, 128>}, {pipeline_mode = #tpu.pipeline_mode<synchronous>, transform_indices = @transform_2, window_bounds = array<i64: 128, 128>}, {pipeline_mode = #tpu.pipeline_mode<synchronous>, transform_indices = @transform_3, window_bounds = array<i64: 1, 128>}, {transform_indices = @transform_4, window_bounds = array<i64: 128, 1>}, {transform_indices = @transform_5, window_bounds = array<i64: 128, 128>}]} {
    %c0_i32 = arith.constant 0 : i32
    %0 = arith.cmpi eq, %arg1, %c0_i32 : i32
    %1 = arith.extui %0 : i1 to i32
    %c0_i32_0 = arith.constant 0 : i32
    %2 = arith.cmpi ne, %1, %c0_i32_0 : i32
    scf.if %2 {
      %cst_10 = arith.constant 0.000000e+00 : f32
      %12 = vector.broadcast %cst_10 : f32 to vector<128x128xf32>
      %c0_11 = arith.constant 0 : index
      %c0_12 = arith.constant 0 : index
      %13 = vector.load %arg8[%c0_11, %c0_12] : memref<128x128xf32, #tpu.memory_space<vmem>>, vector<128x128xf32>
      tpu.vector_store %arg8[%c0_11, %c0_12], %12 {strides = array<i32>} : memref<128x128xf32, #tpu.memory_space<vmem>>, vector<128x128xf32>,
    } else {
    }
    %c0 = arith.constant 0 : index
    %c0_1 = arith.constant 0 : index
    %3 = vector.load %arg8[%c0, %c0_1] : memref<128x128xf32, #tpu.memory_space<vmem>>, vector<128x128xf32>
    %c0_2 = arith.constant 0 : index
    %c0_3 = arith.constant 0 : index
    %4 = vector.load %arg2[%c0_2, %c0_3] : memref<128x128xbf16, #tpu.memory_space<vmem>>, vector<128x128xbf16>
    %c0_4 = arith.constant 0 : index
    %c0_5 = arith.constant 0 : index
    %5 = vector.load %arg3[%c0_4, %c0_5] : memref<128x128xbf16, #tpu.memory_space<vmem>>, vector<128x128xbf16>
    %cst = arith.constant dense<0.000000e+00> : vector<128x128xf32>
    %6 = tpu.matmul %4, %5, %cst {dimension_numbers = #tpu.dot_dimension_numbers<[1], [0], [0], [1], [0, 0, 1, 1], [], []>} : vector<128x128xbf16>, vector<128x128xbf16>, vector<128x128xf32> -> vector<128x128xf32>
    %7 = arith.addf %3, %6 : vector<128x128xf32>
    %c0_6 = arith.constant 0 : index
    %c0_7 = arith.constant 0 : index
    %8 = vector.load %arg8[%c0_6, %c0_7] : memref<128x128xf32, #tpu.memory_space<vmem>>, vector<128x128xf32>
    tpu.vector_store %arg8[%c0_6, %c0_7], %7 {strides = array<i32>} : memref<128x128xf32, #tpu.memory_space<vmem>>, vector<128x128xf32>,
    %c0_i32_8 = arith.constant 0 : i32
    %9 = arith.cmpi eq, %arg1, %c0_i32_8 : i32
    %10 = arith.extui %9 : i1 to i32
    %c0_i32_9 = arith.constant 0 : i32
    %11 = arith.cmpi ne, %10, %c0_i32_9 : i32
    scf.if %11 {
      %c0_10 = arith.constant 0 : index
      %c0_11 = arith.constant 0 : index
      %12 = vector.load %arg8[%c0_10, %c0_11] : memref<128x128xf32, #tpu.memory_space<vmem>>, vector<128x128xf32>
      %c0_12 = arith.constant 0 : index
      %c0_13 = arith.constant 0 : index
      %13 = vector.load %arg6[%c0_12, %c0_13] : memref<128x1xf32, #tpu.memory_space<vmem>>, vector<128x1xf32>
      %14 = vector.broadcast %13 : vector<128x1xf32> to vector<128x128xf32>
      %15 = arith.mulf %12, %14 : vector<128x128xf32>
      %16 = arith.truncf %15 : vector<128x128xf32> to vector<128x128xbf16>
      %c0_14 = arith.constant 0 : index
      %c0_15 = arith.constant 0 : index
      %17 = vector.load %arg4[%c0_14, %c0_15] : memref<128x128xbf16, #tpu.memory_space<vmem>>, vector<128x128xbf16>
      %cst_16 = arith.constant dense<0.000000e+00> : vector<128x128xf32>
      %18 = tpu.matmul %16, %17, %cst_16 {dimension_numbers = #tpu.dot_dimension_numbers<[1], [0], [0], [1], [0, 0, 1, 1], [], []>} : vector<128x128xbf16>, vector<128x128xbf16>, vector<128x128xf32> -> vector<128x128xf32>
      %c0_17 = arith.constant 0 : index
      %c0_18 = arith.constant 0 : index
      %19 = vector.load %arg5[%c0_17, %c0_18] : memref<1x128xf32, #tpu.memory_space<vmem>>, vector<1x128xf32>
      %20 = vector.broadcast %19 : vector<1x128xf32> to vector<128x128xf32>
      %21 = arith.addf %18, %20 : vector<128x128xf32>
      %cst_19 = arith.constant 0.000000e+00 : f32
      %22 = vector.broadcast %cst_19 : f32 to vector<128x128xf32>
      %23 = arith.maximumf %21, %22 : vector<128x128xf32>
      %24 = arith.truncf %23 : vector<128x128xf32> to vector<128x128xbf16>
      %c0_20 = arith.constant 0 : index
      %c0_21 = arith.constant 0 : index
      %25 = vector.load %arg7[%c0_20, %c0_21] : memref<128x128xbf16, #tpu.memory_space<vmem>>, vector<128x128xbf16>
      tpu.vector_store %arg7[%c0_20, %c0_21], %24 {strides = array<i32>} : memref<128x128xbf16, #tpu.memory_space<vmem>>, vector<128x128xbf16>,
    } else {
    }
    return
  }
  func.func @transform_0(%arg0: i32, %arg1: i32) -> (i32, i32) {
    %c0_i32 = arith.constant 0 : i32
    return %arg0, %arg1 : i32, i32
  }
  func.func @transform_1(%arg0: i32, %arg1: i32) -> (i32, i32) {
    %c0_i32 = arith.constant 0 : i32
    %c0_i32_0 = arith.constant 0 : i32
    return %arg1, %c0_i32 : i32, i32
  }
  func.func @transform_2(%arg0: i32, %arg1: i32) -> (i32, i32) {
    %c0_i32 = arith.constant 0 : i32
    %c0_i32_0 = arith.constant 0 : i32
    %c0_i32_1 = arith.constant 0 : i32
    return %c0_i32, %c0_i32_0 : i32, i32
  }
  func.func @transform_3(%arg0: i32, %arg1: i32) -> (i32, i32) {
    %c0_i32 = arith.constant 0 : i32
    %c0_i32_0 = arith.constant 0 : i32
    %c0_i32_1 = arith.constant 0 : i32
    return %c0_i32, %c0_i32_0 : i32, i32
  }
  func.func @transform_4(%arg0: i32, %arg1: i32) -> (i32, i32) {
    %c0_i32 = arith.constant 0 : i32
    %c0_i32_0 = arith.constant 0 : i32
    return %arg0, %c0_i32 : i32, i32
  }
  func.func @transform_5(%arg0: i32, %arg1: i32) -> (i32, i32) {
    %c0_i32 = arith.constant 0 : i32
    %c0_i32_0 = arith.constant 0 : i32
    return %arg0, %c0_i32 : i32, i32
  }
}

</mosaic_0001>

<llo_original>
// kernel: tpu_custom_call.1
$region0: #{tpu_custom_call.1}
  #allocation0 [shape = 'u32[]', space=smem, size = 0x4, offset = 0x4, fixed_abs, tag = 'smem constant byte address 0x4 - core index']
  #allocation1 [shape = 'u32[72,128]{1,0:T(1,128)}', space=vmem, size = 0x9000, scoped, tag = 'internal scratch']
  #allocation2 [shape = 'f32[128,128]{1,0:T(8,128)}', space=vmem, size = 0x10000, scoped, tag = 'scratch operand']
  %s0 = inlined_call_operand.vmem [shape: bf16[128,128], index: 0, kind: input, shape index: {}]
  %s1 = inlined_call_operand.vmem [shape: bf16[128,128], index: 1, kind: input, shape index: {}]
  %s2 = inlined_call_operand.hbm [shape: bf16[128,128], index: 2, kind: input, shape index: {}]
  %s3 = inlined_call_operand.vmem [shape: f32[1,128], index: 3, kind: input, shape index: {}]
  %s4 = inlined_call_operand.vmem [shape: f32[128,1], index: 4, kind: input, shape index: {}]
  %s5 = inlined_call_operand.hbm [shape: bf16[128,128], index: 5, kind: output, shape index: {}]
  %s6 = sld [smem:[#allocation0]]
  $region42: #{tpu_custom_call.1} parent=0
    _
  %s8 = ssub.s32 1, %s6
  %s9 = scalar_select 0, %s8, %s6
  $region1: #{tpu_custom_call.1} parent=0
    #allocation3 [shape = 'u8[32768]{0}', space=vmem, size = 0x8000, scoped, tag = 'input window, operand 2, single buffered']
    #allocation4 [shape = 's32[1]{0}', space=sflag, size = 0x4, scoped, tag = 'scoped memory for tpu_custom_call.1']
    #allocation5 [shape = 's32[1]{0}', space=sflag, size = 0x4, scoped, tag = 'scoped memory for tpu_custom_call.1']
    #allocation6 [shape = 'u8[32768]{0}', space=vmem, size = 0x8000, scoped, tag = 'output window, operand 0, single buffered']
    %10 = vsyncpa [#allocation4], 0
    %11 = vsyncpa [#allocation5], 0
    // Predicated region
    $region2: #{tpu_custom_call.1} parent=1 // pred_check
      _
    $region3: #{tpu_custom_call.1} parent=1 // pred_check_branch
      %13 = sbr.rel (0) target = $region5
    $region4: #{tpu_custom_call.1} parent=1 // pred_region
      _
    $region5: #{tpu_custom_call.1} parent=1 // pred_fallthru
      _
    // Predicated region
    $region6: #{tpu_custom_call.1} parent=1 // pred_check
      _
    $region7: #{tpu_custom_call.1} parent=1 // pred_check_branch
      %15 = sbr.rel (0) target = $region9
    $region8: #{tpu_custom_call.1} parent=1 // pred_region
      _
    $region9: #{tpu_custom_call.1} parent=1 // pred_fallthru
      _
    // Predicated region
    $region10: #{tpu_custom_call.1} parent=1 // pred_check
      _
    $region11: #{tpu_custom_call.1} parent=1 // pred_check_branch
      %17 = sbr.rel (0) target = $region13
    $region12: #{tpu_custom_call.1} parent=1 // pred_region
      %19 = vsyncadd [#allocation4], 0
      %s20 = sshll.u32 %s2, 4
      %s21 = int_to_ptr.hbm [resolvable:$true] %s20
      %s22 = sshll.u32 [#allocation3], 4
      %s23 = int_to_ptr.vmem [resolvable:$true] %s22
      %28 = dma.hbm_to_vmem [thread:$0]  %s21, 1024, %s23, [#allocation4], 64, 64, 4
    $region13: #{tpu_custom_call.1} parent=1 // pred_fallthru
      _
    // Predicated region
    $region14: #{tpu_custom_call.1} parent=1 // pred_check
      _
    $region15: #{tpu_custom_call.1} parent=1 // pred_check_branch
      %30 = sbr.rel (0) target = $region17
    $region16: #{tpu_custom_call.1} parent=1 // pred_region
      _
    $region17: #{tpu_custom_call.1} parent=1 // pred_fallthru
      _
    // Predicated region
    $region18: #{tpu_custom_call.1} parent=1 // pred_check
      _
    $region19: #{tpu_custom_call.1} parent=1 // pred_check_branch
      %32 = sbr.rel (0) target = $region21
    $region20: #{tpu_custom_call.1} parent=1 // pred_region
      _
    $region21: #{tpu_custom_call.1} parent=1 // pred_fallthru
      _
    // Predicated region
    $region22: #{tpu_custom_call.1} parent=1 // pred_check
      _
    $region23: #{tpu_custom_call.1} parent=1 // pred_check_branch
      %34 = sbr.rel (0) target = $region25
    $region24: #{tpu_custom_call.1} parent=1 // pred_region
      %36 = dma.done [#allocation4], 1024
    $region25: #{tpu_custom_call.1} parent=1 // pred_fallthru
      _
    %p37 = scmp.eq.s32.totalorder 0, 0
    // Predicated region
    $region26: #{tpu_custom_call.1} parent=1 // pred_check
      %p38 = pneg %p37
    $region27: #{tpu_custom_call.1} parent=1 // pred_check_branch
      %40 = sbr.rel (%p38) target = $region29
    $region28: #{tpu_custom_call.1} parent=1 // pred_region
      %41 = vst [vmem:[#allocation2] sm:$0xff] 0.0
      %42 = vst [vmem:[#allocation2 + $0x8] sm:$0xff] 0.0
      %43 = vst [vmem:[#allocation2 + $0x10] sm:$0xff] 0.0
      %44 = vst [vmem:[#allocation2 + $0x18] sm:$0xff] 0.0
      %45 = vst [vmem:[#allocation2 + $0x20] sm:$0xff] 0.0
      %46 = vst [vmem:[#allocation2 + $0x28] sm:$0xff] 0.0
      %47 = vst [vmem:[#allocation2 + $0x30] sm:$0xff] 0.0
      %48 = vst [vmem:[#allocation2 + $0x38] sm:$0xff] 0.0
      %49 = vst [vmem:[#allocation2 + $0x40] sm:$0xff] 0.0
      %50 = vst [vmem:[#allocation2 + $0x48] sm:$0xff] 0.0
      %51 = vst [vmem:[#allocation2 + $0x50] sm:$0xff] 0.0
      %52 = vst [vmem:[#allocation2 + $0x58] sm:$0xff] 0.0
      %53 = vst [vmem:[#allocation2 + $0x60] sm:$0xff] 0.0
      %54 = vst [vmem:[#allocation2 + $0x68] sm:$0xff] 0.0
      %55 = vst [vmem:[#allocation2 + $0x70] sm:$0xff] 0.0
      %56 = vst [vmem:[#allocation2 + $0x78] sm:$0xff] 0.0
    $region29: #{tpu_custom_call.1} parent=1 // pred_fallthru
      _
    %v57 = vld [vmem:[#allocation2] sm:$0xff]
    %v58 = vld [vmem:[#allocation2 + $0x8] sm:$0xff]
    %v59 = vld [vmem:[#allocation2 + $0x10] sm:$0xff]
    %v60 = vld [vmem:[#allocation2 + $0x18] sm:$0xff]
    %v61 = vld [vmem:[#allocation2 + $0x20] sm:$0xff]
    %v62 = vld [vmem:[#allocation2 + $0x28] sm:$0xff]
    %v63 = vld [vmem:[#allocation2 + $0x30] sm:$0xff]
    %v64 = vld [vmem:[#allocation2 + $0x38] sm:$0xff]
    %v65 = vld [vmem:[#allocation2 + $0x40] sm:$0xff]
    %v66 = vld [vmem:[#allocation2 + $0x48] sm:$0xff]
    %v67 = vld [vmem:[#allocation2 + $0x50] sm:$0xff]
    %v68 = vld [vmem:[#allocation2 + $0x58] sm:$0xff]
    %v69 = vld [vmem:[#allocation2 + $0x60] sm:$0xff]
    %v70 = vld [vmem:[#allocation2 + $0x68] sm:$0xff]
    %v71 = vld [vmem:[#allocation2 + $0x70] sm:$0xff]
    %v72 = vld [vmem:[#allocation2 + $0x78] sm:$0xff]
    %v73 = vld [vmem:[%s0] sm:$0xf]
    %v74 = vld [vmem:[%s0 + $0x4] sm:$0xf]
    %v75 = vld [vmem:[%s0 + $0x8] sm:$0xf]
    %v76 = vld [vmem:[%s0 + $0xc] sm:$0xf]
    %v77 = vld [vmem:[%s0 + $0x10] sm:$0xf]
    %v78 = vld [vmem:[%s0 + $0x14] sm:$0xf]
    %v79 = vld [vmem:[%s0 + $0x18] sm:$0xf]
    %v80 = vld [vmem:[%s0 + $0x1c] sm:$0xf]
    %v81 = vld [vmem:[%s0 + $0x20] sm:$0xf]
    %v82 = vld [vmem:[%s0 + $0x24] sm:$0xf]
    %v83 = vld [vmem:[%s0 + $0x28] sm:$0xf]
    %v84 = vld [vmem:[%s0 + $0x2c] sm:$0xf]
    %v85 = vld [vmem:[%s0 + $0x30] sm:$0xf]
    %v86 = vld [vmem:[%s0 + $0x34] sm:$0xf]
    %v87 = vld [vmem:[%s0 + $0x38] sm:$0xf]
    %v88 = vld [vmem:[%s0 + $0x3c] sm:$0xf]
    %v89 = vld [vmem:[%s1] sm:$0xf]
    %v90 = vld [vmem:[%s1 + $0x4] sm:$0xf]
    %v91 = vld [vmem:[%s1 + $0x8] sm:$0xf]
    %v92 = vld [vmem:[%s1 + $0xc] sm:$0xf]
    %v93 = vld [vmem:[%s1 + $0x10] sm:$0xf]
    %v94 = vld [vmem:[%s1 + $0x14] sm:$0xf]
    %v95 = vld [vmem:[%s1 + $0x18] sm:$0xf]
    %v96 = vld [vmem:[%s1 + $0x1c] sm:$0xf]
    %v97 = vld [vmem:[%s1 + $0x20] sm:$0xf]
    %v98 = vld [vmem:[%s1 + $0x24] sm:$0xf]
    %v99 = vld [vmem:[%s1 + $0x28] sm:$0xf]
    %v100 = vld [vmem:[%s1 + $0x2c] sm:$0xf]
    %v101 = vld [vmem:[%s1 + $0x30] sm:$0xf]
    %v102 = vld [vmem:[%s1 + $0x34] sm:$0xf]
    %v103 = vld [vmem:[%s1 + $0x38] sm:$0xf]
    %v104 = vld [vmem:[%s1 + $0x3c] sm:$0xf]
    %v121 = vunpack.c.l.b16 %v73
    %v122 = vunpack.c.l.b16 %v74
    %v123 = vunpack.c.l.b16 %v75
    %v124 = vunpack.c.l.b16 %v76
    %v125 = vunpack.c.l.b16 %v77
    %v126 = vunpack.c.l.b16 %v78
    %v127 = vunpack.c.l.b16 %v79
    %v128 = vunpack.c.l.b16 %v80
    %v129 = vunpack.c.l.b16 %v81
    %v130 = vunpack.c.l.b16 %v82
    %v131 = vunpack.c.l.b16 %v83
    %v132 = vunpack.c.l.b16 %v84
    %v133 = vunpack.c.l.b16 %v85
    %v134 = vunpack.c.l.b16 %v86
    %v135 = vunpack.c.l.b16 %v87
    %v136 = vunpack.c.l.b16 %v88
    %v137 = vpack.c.b16 %v122, %v121
    %v138 = vpack.c.b16 %v124, %v123
    %v139 = vpack.c.b16 %v126, %v125
    %v140 = vpack.c.b16 %v128, %v127
    %v141 = vpack.c.b16 %v130, %v129
    %v142 = vpack.c.b16 %v132, %v131
    %v143 = vpack.c.b16 %v134, %v133
    %v144 = vpack.c.b16 %v136, %v135
    %v169 = vunpack.c.l.b16 %v89
    %v170 = vunpack.c.l.b16 %v90
    %v171 = vunpack.c.l.b16 %v91
    %v172 = vunpack.c.l.b16 %v92
    %v173 = vunpack.c.l.b16 %v93
    %v174 = vunpack.c.l.b16 %v94
    %v175 = vunpack.c.l.b16 %v95
    %v176 = vunpack.c.l.b16 %v96
    %v177 = vunpack.c.l.b16 %v97
    %v178 = vunpack.c.l.b16 %v98
    %v179 = vunpack.c.l.b16 %v99
    %v180 = vunpack.c.l.b16 %v100
    %v181 = vunpack.c.l.b16 %v101
    %v182 = vunpack.c.l.b16 %v102
    %v183 = vunpack.c.l.b16 %v103
    %v184 = vunpack.c.l.b16 %v104
    %v185 = vpack.c.b16 %v170, %v169
    %v186 = vpack.c.b16 %v172, %v171
    %v187 = vpack.c.b16 %v174, %v173
    %v188 = vpack.c.b16 %v176, %v175
    %v189 = vpack.c.b16 %v178, %v177
    %v190 = vpack.c.b16 %v180, %v179
    %v191 = vpack.c.b16 %v182, %v181
    %v192 = vpack.c.b16 %v184, %v183
    %201 = vmatpush.bf16.msra.mxu0 %v192
    %202 = vmatpush.bf16.msra.mxu0 %v191
    %203 = vmatpush.bf16.msra.mxu0 %v190
    %204 = vmatpush.bf16.msra.mxu0 %v189
    %205 = vmatpush.bf16.msra.mxu0 %v188
    %206 = vmatpush.bf16.msra.mxu0 %v187
    %207 = vmatpush.bf16.msra.mxu0 %v186
    %208 = vmatpush.bf16.msra.mxu0 %v185
    %209 = vmatmul.bf16.gmra.mxu0 %v137
    %v210 = vpop.f32.mrf.mxu0
    %v211 = vadd.f32 0.0, %v210
    %v212 = vpop.f32.mrf.mxu0
    %v213 = vadd.f32 0.0, %v212
    %214 = vmatmul.bf16.gmra.mxu0 %v138
    %v215 = vpop.f32.mrf.mxu0
    %v216 = vadd.f32 0.0, %v215
    %v217 = vpop.f32.mrf.mxu0
    %v218 = vadd.f32 0.0, %v217
    %219 = vmatmul.bf16.gmra.mxu0 %v139
    %v220 = vpop.f32.mrf.mxu0
    %v221 = vadd.f32 0.0, %v220
    %v222 = vpop.f32.mrf.mxu0
    %v223 = vadd.f32 0.0, %v222
    %224 = vmatmul.bf16.gmra.mxu0 %v140
    %v225 = vpop.f32.mrf.mxu0
    %v226 = vadd.f32 0.0, %v225
    %v227 = vpop.f32.mrf.mxu0
    %v228 = vadd.f32 0.0, %v227
    %229 = vmatmul.bf16.gmra.mxu0 %v141
    %v230 = vpop.f32.mrf.mxu0
    %v231 = vadd.f32 0.0, %v230
    %v232 = vpop.f32.mrf.mxu0
    %v233 = vadd.f32 0.0, %v232
    %234 = vmatmul.bf16.gmra.mxu0 %v142
    %v235 = vpop.f32.mrf.mxu0
    %v236 = vadd.f32 0.0, %v235
    %v237 = vpop.f32.mrf.mxu0
    %v238 = vadd.f32 0.0, %v237
    %239 = vmatmul.bf16.gmra.mxu0 %v143
    %v240 = vpop.f32.mrf.mxu0
    %v241 = vadd.f32 0.0, %v240
    %v242 = vpop.f32.mrf.mxu0
    %v243 = vadd.f32 0.0, %v242
    %244 = vmatmul.bf16.gmra.mxu0 %v144
    %v245 = vpop.f32.mrf.mxu0
    %v246 = vadd.f32 0.0, %v245
    %v247 = vpop.f32.mrf.mxu0
    %v248 = vadd.f32 0.0, %v247
    %249 = vdwg.mxu0
    %v250 = vadd.f32 %v57, %v211
    %v251 = vadd.f32 %v58, %v213
    %v252 = vadd.f32 %v59, %v216
    %v253 = vadd.f32 %v60, %v218
    %v254 = vadd.f32 %v61, %v221
    %v255 = vadd.f32 %v62, %v223
    %v256 = vadd.f32 %v63, %v226
    %v257 = vadd.f32 %v64, %v228
    %v258 = vadd.f32 %v65, %v231
    %v259 = vadd.f32 %v66, %v233
    %v260 = vadd.f32 %v67, %v236
    %v261 = vadd.f32 %v68, %v238
    %v262 = vadd.f32 %v69, %v241
    %v263 = vadd.f32 %v70, %v243
    %v264 = vadd.f32 %v71, %v246
    %v265 = vadd.f32 %v72, %v248
    %266 = vst [vmem:[#allocation2] sm:$0xff] %v250
    %267 = vst [vmem:[#allocation2 + $0x8] sm:$0xff] %v251
    %268 = vst [vmem:[#allocation2 + $0x10] sm:$0xff] %v252
    %269 = vst [vmem:[#allocation2 + $0x18] sm:$0xff] %v253
    %270 = vst [vmem:[#allocation2 + $0x20] sm:$0xff] %v254
    %271 = vst [vmem:[#allocation2 + $0x28] sm:$0xff] %v255
    %272 = vst [vmem:[#allocation2 + $0x30] sm:$0xff] %v256
    %273 = vst [vmem:[#allocation2 + $0x38] sm:$0xff] %v257
    %274 = vst [vmem:[#allocation2 + $0x40] sm:$0xff] %v258
    %275 = vst [vmem:[#allocation2 + $0x48] sm:$0xff] %v259
    %276 = vst [vmem:[#allocation2 + $0x50] sm:$0xff] %v260
    %277 = vst [vmem:[#allocation2 + $0x58] sm:$0xff] %v261
    %278 = vst [vmem:[#allocation2 + $0x60] sm:$0xff] %v262
    %279 = vst [vmem:[#allocation2 + $0x68] sm:$0xff] %v263
    %280 = vst [vmem:[#allocation2 + $0x70] sm:$0xff] %v264
    %281 = vst [vmem:[#allocation2 + $0x78] sm:$0xff] %v265
    // Predicated region
    $region30: #{tpu_custom_call.1} parent=1 // pred_check
      %p282 = pneg %p37
    $region31: #{tpu_custom_call.1} parent=1 // pred_check_branch
      %284 = sbr.rel (%p282) target = $region33
    $region32: #{tpu_custom_call.1} parent=1 // pred_region
      %v285 = vld [vmem:[#allocation2] sm:$0xff]
      %v286 = vld [vmem:[#allocation2 + $0x8] sm:$0xff]
      %v287 = vld [vmem:[#allocation2 + $0x10] sm:$0xff]
      %v288 = vld [vmem:[#allocation2 + $0x18] sm:$0xff]
      %v289 = vld [vmem:[#allocation2 + $0x20] sm:$0xff]
      %v290 = vld [vmem:[#allocation2 + $0x28] sm:$0xff]
      %v291 = vld [vmem:[#allocation2 + $0x30] sm:$0xff]
      %v292 = vld [vmem:[#allocation2 + $0x38] sm:$0xff]
      %v293 = vld [vmem:[#allocation2 + $0x40] sm:$0xff]
      %v294 = vld [vmem:[#allocation2 + $0x48] sm:$0xff]
      %v295 = vld [vmem:[#allocation2 + $0x50] sm:$0xff]
      %v296 = vld [vmem:[#allocation2 + $0x58] sm:$0xff]
      %v297 = vld [vmem:[#allocation2 + $0x60] sm:$0xff]
      %v298 = vld [vmem:[#allocation2 + $0x68] sm:$0xff]
      %v299 = vld [vmem:[#allocation2 + $0x70] sm:$0xff]
      %v300 = vld [vmem:[#allocation2 + $0x78] sm:$0xff]
      %v301 = vld [vmem:[%s4] sm:$0xff]
      %v302 = vld [vmem:[%s4 + $0x8] sm:$0xff]
      %v303 = vld [vmem:[%s4 + $0x10] sm:$0xff]
      %v304 = vld [vmem:[%s4 + $0x18] sm:$0xff]
      %v305 = vld [vmem:[%s4 + $0x20] sm:$0xff]
      %v306 = vld [vmem:[%s4 + $0x28] sm:$0xff]
      %v307 = vld [vmem:[%s4 + $0x30] sm:$0xff]
      %v308 = vld [vmem:[%s4 + $0x38] sm:$0xff]
      %v309 = vld [vmem:[%s4 + $0x40] sm:$0xff]
      %v310 = vld [vmem:[%s4 + $0x48] sm:$0xff]
      %v311 = vld [vmem:[%s4 + $0x50] sm:$0xff]
      %v312 = vld [vmem:[%s4 + $0x58] sm:$0xff]
      %v313 = vld [vmem:[%s4 + $0x60] sm:$0xff]
      %v314 = vld [vmem:[%s4 + $0x68] sm:$0xff]
      %v315 = vld [vmem:[%s4 + $0x70] sm:$0xff]
      %v316 = vld [vmem:[%s4 + $0x78] sm:$0xff]
      %318 = vset.pattern.permute.xlu0 0
      %319 = vperm.xlu0 %318, %v301
      %v320 = vpop.permute.xlu0 %319
      %323 = vset.pattern.permute.xlu0 0
      %324 = vperm.xlu0 %323, %v302
      %v325 = vpop.permute.xlu0 %324
      %328 = vset.pattern.permute.xlu0 0
      %329 = vperm.xlu0 %328, %v303
      %v330 = vpop.permute.xlu0 %329
      %333 = vset.pattern.permute.xlu0 0
      %334 = vperm.xlu0 %333, %v304
      %v335 = vpop.permute.xlu0 %334
      %338 = vset.pattern.permute.xlu0 0
      %339 = vperm.xlu0 %338, %v305
      %v340 = vpop.permute.xlu0 %339
      %343 = vset.pattern.permute.xlu0 0
      %344 = vperm.xlu0 %343, %v306
      %v345 = vpop.permute.xlu0 %344
      %348 = vset.pattern.permute.xlu0 0
      %349 = vperm.xlu0 %348, %v307
      %v350 = vpop.permute.xlu0 %349
      %353 = vset.pattern.permute.xlu0 0
      %354 = vperm.xlu0 %353, %v308
      %v355 = vpop.permute.xlu0 %354
      %358 = vset.pattern.permute.xlu0 0
      %359 = vperm.xlu0 %358, %v309
      %v360 = vpop.permute.xlu0 %359
      %363 = vset.pattern.permute.xlu0 0
      %364 = vperm.xlu0 %363, %v310
      %v365 = vpop.permute.xlu0 %364
      %368 = vset.pattern.permute.xlu0 0
      %369 = vperm.xlu0 %368, %v311
      %v370 = vpop.permute.xlu0 %369
      %373 = vset.pattern.permute.xlu0 0
      %374 = vperm.xlu0 %373, %v312
      %v375 = vpop.permute.xlu0 %374
      %378 = vset.pattern.permute.xlu0 0
      %379 = vperm.xlu0 %378, %v313
      %v380 = vpop.permute.xlu0 %379
      %383 = vset.pattern.permute.xlu0 0
      %384 = vperm.xlu0 %383, %v314
      %v385 = vpop.permute.xlu0 %384
      %388 = vset.pattern.permute.xlu0 0
      %389 = vperm.xlu0 %388, %v315
      %v390 = vpop.permute.xlu0 %389
      %393 = vset.pattern.permute.xlu0 0
      %394 = vperm.xlu0 %393, %v316
      %v395 = vpop.permute.xlu0 %394
      %v397 = vmul.f32 %v285, %v320
      %v398 = vmul.f32 %v286, %v325
      %v399 = vmul.f32 %v287, %v330
      %v400 = vmul.f32 %v288, %v335
      %v401 = vmul.f32 %v289, %v340
      %v402 = vmul.f32 %v290, %v345
      %v403 = vmul.f32 %v291, %v350
      %v404 = vmul.f32 %v292, %v355
      %v405 = vmul.f32 %v293, %v360
      %v406 = vmul.f32 %v294, %v365
      %v407 = vmul.f32 %v295, %v370
      %v408 = vmul.f32 %v296, %v375
      %v409 = vmul.f32 %v297, %v380
      %v410 = vmul.f32 %v298, %v385
      %v411 = vmul.f32 %v299, %v390
      %v412 = vmul.f32 %v300, %v395
      %v413 = vpack.c.bf16 %v398, %v397
      %v414 = vpack.c.bf16 %v400, %v399
      %v415 = vpack.c.bf16 %v402, %v401
      %v416 = vpack.c.bf16 %v404, %v403
      %v417 = vpack.c.bf16 %v406, %v405
      %v418 = vpack.c.bf16 %v408, %v407
      %v419 = vpack.c.bf16 %v410, %v409
      %v420 = vpack.c.bf16 %v412, %v411
      %v421 = vld [vmem:[#allocation3] sm:$0xf]
      %v422 = vld [vmem:[#allocation3 + $0x4] sm:$0xf]
      %v423 = vld [vmem:[#allocation3 + $0x8] sm:$0xf]
      %v424 = vld [vmem:[#allocation3 + $0xc] sm:$0xf]
      %v425 = vld [vmem:[#allocation3 + $0x10] sm:$0xf]
      %v426 = vld [vmem:[#allocation3 + $0x14] sm:$0xf]
      %v427 = vld [vmem:[#allocation3 + $0x18] sm:$0xf]
      %v428 = vld [vmem:[#allocation3 + $0x1c] sm:$0xf]
      %v429 = vld [vmem:[#allocation3 + $0x20] sm:$0xf]
      %v430 = vld [vmem:[#allocation3 + $0x24] sm:$0xf]
      %v431 = vld [vmem:[#allocation3 + $0x28] sm:$0xf]
      %v432 = vld [vmem:[#allocation3 + $0x2c] sm:$0xf]
      %v433 = vld [vmem:[#allocation3 + $0x30] sm:$0xf]
      %v434 = vld [vmem:[#allocation3 + $0x34] sm:$0xf]
      %v435 = vld [vmem:[#allocation3 + $0x38] sm:$0xf]
      %v436 = vld [vmem:[#allocation3 + $0x3c] sm:$0xf]
      %v437 = vld [vmem:[%s3] sm:$0x1]
      %v439 = vperm.slane %v437, 0
      %v457 = vunpack.c.l.b16 %v421
      %v458 = vunpack.c.l.b16 %v422
      %v459 = vunpack.c.l.b16 %v423
      %v460 = vunpack.c.l.b16 %v424
      %v461 = vunpack.c.l.b16 %v425
      %v462 = vunpack.c.l.b16 %v426
      %v463 = vunpack.c.l.b16 %v427
      %v464 = vunpack.c.l.b16 %v428
      %v465 = vunpack.c.l.b16 %v429
      %v466 = vunpack.c.l.b16 %v430
      %v467 = vunpack.c.l.b16 %v431
      %v468 = vunpack.c.l.b16 %v432
      %v469 = vunpack.c.l.b16 %v433
      %v470 = vunpack.c.l.b16 %v434
      %v471 = vunpack.c.l.b16 %v435
      %v472 = vunpack.c.l.b16 %v436
      %v473 = vpack.c.b16 %v458, %v457
      %v474 = vpack.c.b16 %v460, %v459
      %v475 = vpack.c.b16 %v462, %v461
      %v476 = vpack.c.b16 %v464, %v463
      %v477 = vpack.c.b16 %v466, %v465
      %v478 = vpack.c.b16 %v468, %v467
      %v479 = vpack.c.b16 %v470, %v469
      %v480 = vpack.c.b16 %v472, %v471
      %489 = vmatpush.bf16.msra.mxu0 %v480
      %490 = vmatpush.bf16.msra.mxu0 %v479
      %491 = vmatpush.bf16.msra.mxu0 %v478
      %492 = vmatpush.bf16.msra.mxu0 %v477
      %493 = vmatpush.bf16.msra.mxu0 %v476
      %494 = vmatpush.bf16.msra.mxu0 %v475
      %495 = vmatpush.bf16.msra.mxu0 %v474
      %496 = vmatpush.bf16.msra.mxu0 %v473
      %497 = vmatmul.bf16.gmra.mxu0 %v413
      %v498 = vpop.f32.mrf.mxu0
      %v499 = vadd.f32 %v439, %v498
      %v500 = vpop.f32.mrf.mxu0
      %v501 = vadd.f32 %v439, %v500
      %502 = vmatmul.bf16.gmra.mxu0 %v414
      %v503 = vpop.f32.mrf.mxu0
      %v504 = vadd.f32 %v439, %v503
      %v505 = vpop.f32.mrf.mxu0
      %v506 = vadd.f32 %v439, %v505
      %507 = vmatmul.bf16.gmra.mxu0 %v415
      %v508 = vpop.f32.mrf.mxu0
      %v509 = vadd.f32 %v439, %v508
      %v510 = vpop.f32.mrf.mxu0
      %v511 = vadd.f32 %v439, %v510
      %512 = vmatmul.bf16.gmra.mxu0 %v416
      %v513 = vpop.f32.mrf.mxu0
      %v514 = vadd.f32 %v439, %v513
      %v515 = vpop.f32.mrf.mxu0
      %v516 = vadd.f32 %v439, %v515
      %517 = vmatmul.bf16.gmra.mxu0 %v417
      %v518 = vpop.f32.mrf.mxu0
      %v519 = vadd.f32 %v439, %v518
      %v520 = vpop.f32.mrf.mxu0
      %v521 = vadd.f32 %v439, %v520
      %522 = vmatmul.bf16.gmra.mxu0 %v418
      %v523 = vpop.f32.mrf.mxu0
      %v524 = vadd.f32 %v439, %v523
      %v525 = vpop.f32.mrf.mxu0
      %v526 = vadd.f32 %v439, %v525
      %527 = vmatmul.bf16.gmra.mxu0 %v419
      %v528 = vpop.f32.mrf.mxu0
      %v529 = vadd.f32 %v439, %v528
      %v530 = vpop.f32.mrf.mxu0
      %v531 = vadd.f32 %v439, %v530
      %532 = vmatmul.bf16.gmra.mxu0 %v420
      %v533 = vpop.f32.mrf.mxu0
      %v534 = vadd.f32 %v439, %v533
      %v535 = vpop.f32.mrf.mxu0
      %v536 = vadd.f32 %v439, %v535
      %537 = vdwg.mxu0
      %v538 = vmax.f32 %v499, 0.0
      %v539 = vmax.f32 %v501, 0.0
      %v540 = vmax.f32 %v504, 0.0
      %v541 = vmax.f32 %v506, 0.0
      %v542 = vmax.f32 %v509, 0.0
      %v543 = vmax.f32 %v511, 0.0
      %v544 = vmax.f32 %v514, 0.0
      %v545 = vmax.f32 %v516, 0.0
      %v546 = vmax.f32 %v519, 0.0
      %v547 = vmax.f32 %v521, 0.0
      %v548 = vmax.f32 %v524, 0.0
      %v549 = vmax.f32 %v526, 0.0
      %v550 = vmax.f32 %v529, 0.0
      %v551 = vmax.f32 %v531, 0.0
      %v552 = vmax.f32 %v534, 0.0
      %v553 = vmax.f32 %v536, 0.0
      %v554 = vpack.c.bf16 %v538, %v538
      %v555 = vpack.c.bf16 %v539, %v539
      %v556 = vpack.c.bf16 %v540, %v540
      %v557 = vpack.c.bf16 %v541, %v541
      %v558 = vpack.c.bf16 %v542, %v542
      %v559 = vpack.c.bf16 %v543, %v543
      %v560 = vpack.c.bf16 %v544, %v544
      %v561 = vpack.c.bf16 %v545, %v545
      %v562 = vpack.c.bf16 %v546, %v546
      %v563 = vpack.c.bf16 %v547, %v547
      %v564 = vpack.c.bf16 %v548, %v548
      %v565 = vpack.c.bf16 %v549, %v549
      %v566 = vpack.c.bf16 %v550, %v550
      %v567 = vpack.c.bf16 %v551, %v551
      %v568 = vpack.c.bf16 %v552, %v552
      %v569 = vpack.c.bf16 %v553, %v553
      %570 = vst [vmem:[#allocation6] sm:$0xf] %v554
      %571 = vst [vmem:[#allocation6 + $0x4] sm:$0xf] %v555
      %572 = vst [vmem:[#allocation6 + $0x8] sm:$0xf] %v556
      %573 = vst [vmem:[#allocation6 + $0xc] sm:$0xf] %v557
      %574 = vst [vmem:[#allocation6 + $0x10] sm:$0xf] %v558
      %575 = vst [vmem:[#allocation6 + $0x14] sm:$0xf] %v559
      %576 = vst [vmem:[#allocation6 + $0x18] sm:$0xf] %v560
      %577 = vst [vmem:[#allocation6 + $0x1c] sm:$0xf] %v561
      %578 = vst [vmem:[#allocation6 + $0x20] sm:$0xf] %v562
      %579 = vst [vmem:[#allocation6 + $0x24] sm:$0xf] %v563
      %580 = vst [vmem:[#allocation6 + $0x28] sm:$0xf] %v564
      %581 = vst [vmem:[#allocation6 + $0x2c] sm:$0xf] %v565
      %582 = vst [vmem:[#allocation6 + $0x30] sm:$0xf] %v566
      %583 = vst [vmem:[#allocation6 + $0x34] sm:$0xf] %v567
      %584 = vst [vmem:[#allocation6 + $0x38] sm:$0xf] %v568
      %585 = vst [vmem:[#allocation6 + $0x3c] sm:$0xf] %v569
    $region33: #{tpu_custom_call.1} parent=1 // pred_fallthru
      _
    // Predicated region
    $region34: #{tpu_custom_call.1} parent=1 // pred_check
      _
    $region35: #{tpu_custom_call.1} parent=1 // pred_check_branch
      %587 = sbr.rel (0) target = $region37
    $region36: #{tpu_custom_call.1} parent=1 // pred_region
      %589 = vsyncadd [#allocation5], 0
      %s590 = sshll.u32 [#allocation6], 4
      %s591 = int_to_ptr.vmem [resolvable:$true] %s590
      %s592 = sshll.u32 %s5, 4
      %s593 = int_to_ptr.hbm [resolvable:$true] %s592
      %598 = dma.vmem_to_hbm [thread:$0]  %s591, 1024, %s593, [#allocation5], 64, 64, 4
    $region37: #{tpu_custom_call.1} parent=1 // pred_fallthru
      _
    // Predicated region
    $region38: #{tpu_custom_call.1} parent=1 // pred_check
      _
    $region39: #{tpu_custom_call.1} parent=1 // pred_check_branch
      %600 = sbr.rel (0) target = $region41
    $region40: #{tpu_custom_call.1} parent=1 // pred_region
      %602 = dma.done [#allocation5], 1024
    $region41: #{tpu_custom_call.1} parent=1 // pred_fallthru
      _
    %603 = vsyncpa [#allocation4], 1
    %604 = vsyncpa [#allocation5], 1

</llo_original>
